<compile_context>
chip_gen: v7x
topology: tpu7x:2x2x1
jax: 0.10.0
libtpu: 0.0.40
codegen_flags: <defaults>
</compile_context>

<pallas_src>
import numpy as np
import jax
import jax.numpy as jnp
from jax.experimental import pallas as pl
from jax.experimental.pallas import tpu as pltpu


def _round_up(x, m):
    return (x + m - 1) // m * m


# --------------------- fused embedding + input projection --------------------
def embed_proj_kernel(ids_ref, table_ref, wih_ref, b_ref, emb_ref, gates_ref):
    v = pl.program_id(1)            # vocab slab (reduction axis, "arbitrary")
    nv = pl.num_programs(1)
    vb = table_ref.shape[0]

    @pl.when(v == 0)
    def _():
        emb_ref[...] = jnp.zeros_like(emb_ref)

    ids = ids_ref[...]                                       # (RB, 1) int32
    rows = ids.shape[0]
    local = jax.lax.broadcasted_iota(jnp.int32, (rows, vb), 1)
    onehot = ((local + v * vb) == ids).astype(table_ref.dtype)
    emb_ref[...] += jnp.dot(
        onehot, table_ref[...], preferred_element_type=jnp.float32
    ).astype(emb_ref.dtype)

    @pl.when(v == nv - 1)
    def _():
        # Input projection hoisted out of the recurrence: one large GEMM here,
        # so only h @ W_hh^T remains inside the serial LSTM loop.
        gates_ref[...] = (
            jnp.dot(emb_ref[...], wih_ref[...], preferred_element_type=jnp.float32)
            + b_ref[...]
        ).astype(gates_ref.dtype)


def embed_and_project(ids_flat, table, wih_t, bias_1x4h, *, row_block):
    n_rows = ids_flat.shape[0]
    v_rows, e = table.shape
    g = wih_t.shape[1]

    # Vocab slab sized so the (double-buffered) table block stays ~2 MiB.
    vb_cap = max(8, (2 * 1024 * 1024 // max(4 * e, 1)) // 8 * 8)
    vb = min(v_rows, 2048, vb_cap)
    v_pad = _round_up(v_rows, vb)
    if v_pad > v_rows:
        table = jnp.concatenate(
            [table, jnp.zeros((v_pad - v_rows, e), table.dtype)], axis=0)

    grid = (n_rows // row_block, v_pad // vb)
    return pl.pallas_call(
        embed_proj_kernel,
        out_shape=(jax.ShapeDtypeStruct((n_rows, e), jnp.float32),
                   jax.ShapeDtypeStruct((n_rows, g), jnp.float32)),
        grid_spec=pltpu.PrefetchScalarGridSpec(
            num_scalar_prefetch=0,
            grid=grid,
            in_specs=[
                pl.BlockSpec((row_block, 1), lambda r, v: (r, 0)),   # ids
                pl.BlockSpec((vb, e), lambda r, v: (v, 0)),          # table slab
                pl.BlockSpec((e, g), lambda r, v: (0, 0)),           # W_ih^T
                pl.BlockSpec((1, g), lambda r, v: (0, 0)),           # b_ih + b_hh
            ],
            out_specs=[
                pl.BlockSpec((row_block, e), lambda r, v: (r, 0)),   # embeddings
                pl.BlockSpec((row_block, g), lambda r, v: (r, 0)),   # gates_x
            ],
        ),
        compiler_params=pltpu.CompilerParams(
            dimension_semantics=("parallel", "arbitrary")),
    )(ids_flat, table, wih_t, bias_1x4h)


# ------------------------- chunked LSTM recurrence ---------------------------
# PyTorch gate order (i, f, g, o); gates = gates_x_t + h @ W_hh^T.
def lstm_chunk_kernel(gates_ref, whh_ref, lens_ref, out_ref, h_sc, c_sc):
    chunk = pl.program_id(0)
    tc = gates_ref.shape[0]
    h_dim = h_sc.shape[1]

    @pl.when(chunk == 0)
    def _():
        h_sc[...] = jnp.zeros_like(h_sc)
        c_sc[...] = jnp.zeros_like(c_sc)

    whh = whh_ref[...]                       # (H, 4H) hoisted out of the loop
    lens = lens_ref[...]                     # (B_pad, 1) int32, resident block
    t0 = chunk * tc

    def step(s, carry):
        h, c = carry
        gates = gates_ref[s] + jnp.dot(h, whh, preferred_element_type=jnp.float32)
        i_g = jax.nn.sigmoid(gates[:, 0 * h_dim:1 * h_dim])
        f_g = jax.nn.sigmoid(gates[:, 1 * h_dim:2 * h_dim])
        g_g = jnp.tanh(gates[:, 2 * h_dim:3 * h_dim])
        o_g = jax.nn.sigmoid(gates[:, 3 * h_dim:4 * h_dim])
        c_new = f_g * c + i_g * g_g
        h_new = o_g * jnp.tanh(c_new)
        # pad_packed_sequence semantics: zero outputs at t >= sentence_lens[b].
        mask = ((t0 + s) < lens).astype(jnp.float32)          # (B_pad, 1)
        out_ref[s] = (h_new * mask).astype(out_ref.dtype)
        return h_new, c_new

    carry = (h_sc[...], c_sc[...])           # h/c stay in vregs within a chunk
    if tc <= 32:                             # static trip count -> full unroll
        for s in range(tc):
            carry = step(s, carry)
    else:
        carry = jax.lax.fori_loop(0, tc, step, carry, unroll=8)
    h_sc[...] = carry[0]
    c_sc[...] = carry[1]


def lstm_forward(gates_tm, whh_t, lens_b1, tc):
    t_pad, b_pad, g = gates_tm.shape
    h = whh_t.shape[0]
    return pl.pallas_call(
        lstm_chunk_kernel,
        out_shape=jax.ShapeDtypeStruct((t_pad, b_pad, h), jnp.float32),
        grid_spec=pltpu.PrefetchScalarGridSpec(
            num_scalar_prefetch=0,
            grid=(t_pad // tc,),
            in_specs=[
                pl.BlockSpec((tc, b_pad, g), lambda c: (c, 0, 0)),   # gates_x chunk
                pl.BlockSpec((h, g), lambda c: (0, 0)),              # W_hh^T (resident)
                pl.BlockSpec((b_pad, 1), lambda c: (0, 0)),          # lengths (resident)
            ],
            out_specs=pl.BlockSpec((tc, b_pad, h), lambda c: (c, 0, 0)),
            scratch_shapes=[pltpu.VMEM((b_pad, h), jnp.float32),     # h state
                            pltpu.VMEM((b_pad, h), jnp.float32)],    # c state
        ),
        compiler_params=pltpu.CompilerParams(
            dimension_semantics=("arbitrary",)),   # strictly sequential recurrence
    )(gates_tm, whh_t, lens_b1)


def _pick_time_chunk(t, b_pad, h):
    # Largest time chunk that keeps double-buffered gates/out blocks well under
    # the default 32 MiB scoped-VMEM limit (safe on v7x's 64 MiB physical VMEM).
    budget = 24 * 1024 * 1024
    tc = min(t, 128)
    per_t = 2 * b_pad * (4 * h + h) * 4            # 2x-buffered gates + out per step
    fixed = h * 4 * h * 4 + 2 * b_pad * h * 4      # W_hh^T + h/c scratch
    while tc > 8 and fixed + tc * per_t > budget:
        tc //= 2
    return max(tc, 1)


# ------------------------------ module forward --------------------------------
def sentence_level_rnn_forward(params, x_ids, sentence_lens):
    embed_w = params["embed"]                               # (V, E)
    w_ih = params["w_ih"]                                   # (4H, E)  weight_ih_l0
    w_hh = params["w_hh"]                                   # (4H, H)  weight_hh_l0
    bias = (params["b_ih"] + params["b_hh"]).reshape(1, -1)  # (1, 4H)

    b, t = x_ids.shape
    v, e = embed_w.shape
    h = w_hh.shape[1]
    g = 4 * h

    # --- padding to TPU-friendly extents --------------------------------------
    b_pad = _round_up(b, 8)                      # fill all 8 f32 sublanes
    tc = _pick_time_chunk(t, b_pad, h)
    t_pad = _round_up(t, tc)

    ids_tm = jnp.zeros((t_pad, b_pad), jnp.int32)
    ids_tm = ids_tm.at[:t, :b].set(jnp.asarray(x_ids, jnp.int32).T)   # time-major
    n = t_pad * b_pad
    row_block = n if n <= 512 else 512
    n_pad = _round_up(n, row_block)
    ids_flat = ids_tm.reshape(n, 1)
    if n_pad > n:
        ids_flat = jnp.concatenate(
            [ids_flat, jnp.zeros((n_pad - n, 1), jnp.int32)], axis=0)

    v_pad = _round_up(v, 8)
    table = embed_w
    if v_pad > v:
        table = jnp.concatenate(
            [table, jnp.zeros((v_pad - v, e), embed_w.dtype)], axis=0)

    # --- fused embedding lookup + input projection (one big MXU GEMM) ---------
    emb_flat, gates_flat = embed_and_project(
        ids_flat, table, w_ih.T, bias, row_block=row_block)

    emb_tm = emb_flat[:n].reshape(t_pad, b_pad, e)
    x_embedding = jnp.transpose(emb_tm[:t, :b, :], (1, 0, 2))          # (B, T, E)
    gates_tm = gates_flat[:n].reshape(t_pad, b_pad, g)                 # (T_pad, B_pad, 4H)

    # --- serial recurrence: only h @ W_hh^T per step ---------------------------
    lens_np = np.asarray(sentence_lens).astype(np.int32)               # host lengths
    lens_b1 = jnp.zeros((b_pad, 1), jnp.int32).at[:b, 0].set(jnp.asarray(lens_np))
    out_tm = lstm_forward(gates_tm, w_hh.T, lens_b1, tc)               # (T_pad, B_pad, H)

    # pad_packed_sequence pads only up to the max length in the batch.
    # TODO(synk): max_len uses host-side lengths (as PyTorch does); keeps the
    # function un-jittable over traced lengths but matches the reference API.
    max_len = int(lens_np.max())
    encoder_outputs = jnp.transpose(out_tm[:max_len, :b, :], (1, 0, 2))  # (B, max_len, H)
    return encoder_outputs, x_embedding


# ------------------------------ pure-JAX reference ----------------------------
def _reference_forward(params, x_ids, lens_np):
    emb = params["embed"][jnp.asarray(x_ids)]              # (B, T, E)
    w_ih, w_hh = params["w_ih"], params["w_hh"]
    bias = params["b_ih"] + params["b_hh"]
    b, t, _ = emb.shape
    h = w_hh.shape[1]
    hp = jax.lax.Precision.HIGHEST

    def cell(carry, x_t):
        hs, cs = carry
        gg = (jnp.dot(x_t, w_ih.T, precision=hp)
              + jnp.dot(hs, w_hh.T, precision=hp) + bias)
        i = jax.nn.sigmoid(gg[:, :h])
        f = jax.nn.sigmoid(gg[:, h:2 * h])
        c_t = jnp.tanh(gg[:, 2 * h:3 * h])
        o = jax.nn.sigmoid(gg[:, 3 * h:])
        cs = f * cs + i * c_t
        hs = o * jnp.tanh(cs)
        return (hs, cs), hs

    init = (jnp.zeros((b, h), jnp.float32), jnp.zeros((b, h), jnp.float32))
    _, hs_t = jax.lax.scan(cell, init, jnp.transpose(emb, (1, 0, 2)))
    hs = jnp.transpose(hs_t, (1, 0, 2))                    # (B, T, H)
    mask = (jnp.arange(t)[None, :] < jnp.asarray(lens_np)[:, None])
    hs = hs * mask[..., None].astype(hs.dtype)
    max_len = int(np.asarray(lens_np).max())
    return hs[:, :max_len, :], emb


if __name__ == "__main__":
    vocab_size, embed_size, hidden_num = 50, 32, 32
    B, T = 2, 8

    key = jax.random.PRNGKey(0)
    k1, k2, k3, k4, k5, k6 = jax.random.split(key, 6)
    bound = 1.0 / np.sqrt(hidden_num)
    params = {
        "embed": jax.random.normal(k1, (vocab_size, embed_size), jnp.float32),
        "w_ih": jax.random.uniform(k2, (4 * hidden_num, embed_size), jnp.float32, -bound, bound),
        "w_hh": jax.random.uniform(k3, (4 * hidden_num, hidden_num), jnp.float32, -bound, bound),
        "b_ih": jax.random.uniform(k4, (4 * hidden_num,), jnp.float32, -bound, bound),
        "b_hh": jax.random.uniform(k5, (4 * hidden_num,), jnp.float32, -bound, bound),
    }

    x_ids = jax.random.randint(k6, (B, T), 0, vocab_size, jnp.int32)
    sentence_lens = np.array([T, 5], dtype=np.int32)       # unsorted lengths OK

    encoder_outputs, x_embedding = sentence_level_rnn_forward(params, x_ids, sentence_lens)
    jax.block_until_ready((encoder_outputs, x_embedding))

    assert encoder_outputs.shape == (B, int(sentence_lens.max()), hidden_num)
    assert x_embedding.shape == (B, T, embed_size)

    ref_out, ref_emb = _reference_forward(params, x_ids, sentence_lens)
    np.testing.assert_allclose(np.asarray(x_embedding), np.asarray(ref_emb),
                               rtol=1e-3, atol=1e-3)
    np.testing.assert_allclose(np.asarray(encoder_outputs), np.asarray(ref_out),
                               rtol=1e-3, atol=1e-3)
    print("KERNEL_OK")
</pallas_src>

<mosaic_0001>
module attributes {stable_mosaic.version = 11 : i64} {
  func.func @embed_proj_kernel(%arg0: i32, %arg1: i32, %arg2: memref<64x1xi32, #tpu.memory_space<vmem>>, %arg3: memref<56x32xf32, #tpu.memory_space<vmem>>, %arg4: memref<32x128xf32, #tpu.memory_space<vmem>>, %arg5: memref<1x128xf32, #tpu.memory_space<vmem>>, %arg6: memref<64x32xf32, #tpu.memory_space<vmem>>, %arg7: memref<64x128xf32, #tpu.memory_space<vmem>>) attributes {dimension_semantics = [#tpu.dimension_semantics<parallel>, #tpu.dimension_semantics<arbitrary>], iteration_bounds = array<i64: 1, 1>, scalar_prefetch = 0 : i64, scratch_operands = 0 : i64, tpu.core_type = #tpu.core_type<tc>, window_params = [{transform_indices = @transform_0, window_bounds = array<i64: 64, 1>}, {transform_indices = @transform_1, window_bounds = array<i64: 56, 32>}, {pipeline_mode = #tpu.pipeline_mode<synchronous>, transform_indices = @transform_2, window_bounds = array<i64: 32, 128>}, {pipeline_mode = #tpu.pipeline_mode<synchronous>, transform_indices = @transform_3, window_bounds = array<i64: 1, 128>}, {transform_indices = @transform_4, window_bounds = array<i64: 64, 32>}, {transform_indices = @transform_5, window_bounds = array<i64: 64, 128>}]} {
    %c0_i32 = arith.constant 0 : i32
    %0 = arith.cmpi eq, %arg1, %c0_i32 : i32
    %1 = arith.extui %0 : i1 to i32
    %c0_i32_0 = arith.constant 0 : i32
    %2 = arith.cmpi ne, %1, %c0_i32_0 : i32
    scf.if %2 {
      %cst_10 = arith.constant 0.000000e+00 : f32
      %20 = vector.broadcast %cst_10 : f32 to vector<64x32xf32>
      %c0_11 = arith.constant 0 : index
      %c0_12 = arith.constant 0 : index
      %21 = vector.load %arg6[%c0_11, %c0_12] : memref<64x32xf32, #tpu.memory_space<vmem>>, vector<64x32xf32>
      tpu.vector_store %arg6[%c0_11, %c0_12], %20 {strides = array<i32>} : memref<64x32xf32, #tpu.memory_space<vmem>>, vector<64x32xf32>,
    } else {
    }
    %c0 = arith.constant 0 : index
    %c0_1 = arith.constant 0 : index
    %3 = vector.load %arg2[%c0, %c0_1] : memref<64x1xi32, #tpu.memory_space<vmem>>, vector<64x1xi32>
    %4 = tpu.iota {dimensions = array<i32: 1>} : vector<64x56xi32>
    %c56_i32 = arith.constant 56 : i32
    %5 = arith.muli %arg1, %c56_i32 : i32
    %6 = vector.broadcast %5 : i32 to vector<64x56xi32>
    %7 = arith.addi %4, %6 : vector<64x56xi32>
    %8 = vector.broadcast %3 : vector<64x1xi32> to vector<64x56xi32>
    %9 = arith.cmpi eq, %7, %8 : vector<64x56xi32>
    %10 = arith.extui %9 : vector<64x56xi1> to vector<64x56xi32>
    %11 = arith.sitofp %10 : vector<64x56xi32> to vector<64x56xf32>
    %c0_2 = arith.constant 0 : index
    %c0_3 = arith.constant 0 : index
    %12 = vector.load %arg6[%c0_2, %c0_3] : memref<64x32xf32, #tpu.memory_space<vmem>>, vector<64x32xf32>
    %c0_4 = arith.constant 0 : index
    %c0_5 = arith.constant 0 : index
    %13 = vector.load %arg3[%c0_4, %c0_5] : memref<56x32xf32, #tpu.memory_space<vmem>>, vector<56x32xf32>
    %cst = arith.constant dense<0.000000e+00> : vector<64x32xf32>
    %14 = tpu.matmul %11, %13, %cst {dimension_numbers = #tpu.dot_dimension_numbers<[1], [0], [0], [1], [0, 0, 1, 1], [], []>} : vector<64x56xf32>, vector<56x32xf32>, vector<64x32xf32> -> vector<64x32xf32>
    %15 = arith.addf %12, %14 : vector<64x32xf32>
    %c0_6 = arith.constant 0 : index
    %c0_7 = arith.constant 0 : index
    %16 = vector.load %arg6[%c0_6, %c0_7] : memref<64x32xf32, #tpu.memory_space<vmem>>, vector<64x32xf32>
    tpu.vector_store %arg6[%c0_6, %c0_7], %15 {strides = array<i32>} : memref<64x32xf32, #tpu.memory_space<vmem>>, vector<64x32xf32>,
    %c0_i32_8 = arith.constant 0 : i32
    %17 = arith.cmpi eq, %arg1, %c0_i32_8 : i32
    %18 = arith.extui %17 : i1 to i32
    %c0_i32_9 = arith.constant 0 : i32
    %19 = arith.cmpi ne, %18, %c0_i32_9 : i32
    scf.if %19 {
      %c0_10 = arith.constant 0 : index
      %c0_11 = arith.constant 0 : index
      %20 = vector.load %arg6[%c0_10, %c0_11] : memref<64x32xf32, #tpu.memory_space<vmem>>, vector<64x32xf32>
      %c0_12 = arith.constant 0 : index
      %c0_13 = arith.constant 0 : index
      %21 = vector.load %arg4[%c0_12, %c0_13] : memref<32x128xf32, #tpu.memory_space<vmem>>, vector<32x128xf32>
      %cst_14 = arith.constant dense<0.000000e+00> : vector<64x128xf32>
      %22 = tpu.matmul %20, %21, %cst_14 {dimension_numbers = #tpu.dot_dimension_numbers<[1], [0], [0], [1], [0, 0, 1, 1], [], []>} : vector<64x32xf32>, vector<32x128xf32>, vector<64x128xf32> -> vector<64x128xf32>
      %c0_15 = arith.constant 0 : index
      %c0_16 = arith.constant 0 : index
      %23 = vector.load %arg5[%c0_15, %c0_16] : memref<1x128xf32, #tpu.memory_space<vmem>>, vector<1x128xf32>
      %24 = vector.broadcast %23 : vector<1x128xf32> to vector<64x128xf32>
      %25 = arith.addf %22, %24 : vector<64x128xf32>
      %c0_17 = arith.constant 0 : index
      %c0_18 = arith.constant 0 : index
      %26 = vector.load %arg7[%c0_17, %c0_18] : memref<64x128xf32, #tpu.memory_space<vmem>>, vector<64x128xf32>
      tpu.vector_store %arg7[%c0_17, %c0_18], %25 {strides = array<i32>} : memref<64x128xf32, #tpu.memory_space<vmem>>, vector<64x128xf32>,
    } else {
    }
    return
  }
  func.func @transform_0(%arg0: i32, %arg1: i32) -> (i32, i32) {
    %c0_i32 = arith.constant 0 : i32
    %c0_i32_0 = arith.constant 0 : i32
    return %arg0, %c0_i32 : i32, i32
  }
  func.func @transform_1(%arg0: i32, %arg1: i32) -> (i32, i32) {
    %c0_i32 = arith.constant 0 : i32
    %c0_i32_0 = arith.constant 0 : i32
    return %arg1, %c0_i32 : i32, i32
  }
  func.func @transform_2(%arg0: i32, %arg1: i32) -> (i32, i32) {
    %c0_i32 = arith.constant 0 : i32
    %c0_i32_0 = arith.constant 0 : i32
    %c0_i32_1 = arith.constant 0 : i32
    return %c0_i32, %c0_i32_0 : i32, i32
  }
  func.func @transform_3(%arg0: i32, %arg1: i32) -> (i32, i32) {
    %c0_i32 = arith.constant 0 : i32
    %c0_i32_0 = arith.constant 0 : i32
    %c0_i32_1 = arith.constant 0 : i32
    return %c0_i32, %c0_i32_0 : i32, i32
  }
  func.func @transform_4(%arg0: i32, %arg1: i32) -> (i32, i32) {
    %c0_i32 = arith.constant 0 : i32
    %c0_i32_0 = arith.constant 0 : i32
    return %arg0, %c0_i32 : i32, i32
  }
  func.func @transform_5(%arg0: i32, %arg1: i32) -> (i32, i32) {
    %c0_i32 = arith.constant 0 : i32
    %c0_i32_0 = arith.constant 0 : i32
    return %arg0, %c0_i32 : i32, i32
  }
}

</mosaic_0001>

<llo_original>
// kernel: tpu_custom_call.1
$region0: #{tpu_custom_call.1}
  #allocation0 [shape = 'u32[]', space=smem, size = 0x4, offset = 0x4, fixed_abs, tag = 'smem constant byte address 0x4 - core index']
  #allocation1 [shape = 'u32[144,128]{1,0:T(1,128)}', space=vmem, size = 0x12000, scoped, tag = 'internal scratch']
  %s0 = inlined_call_operand.vmem [shape: s32[64,1], index: 0, kind: input, shape index: {}]
  %s1 = inlined_call_operand.vmem [shape: f32[56,32], index: 1, kind: input, shape index: {}]
  %s2 = inlined_call_operand.vmem [shape: f32[32,128], index: 2, kind: input, shape index: {}]
  %s3 = inlined_call_operand.vmem [shape: f32[1,128], index: 3, kind: input, shape index: {}]
  %s4 = inlined_call_operand.vmem [shape: f32[64,32], index: 4, kind: output, shape index: {0}]
  %s5 = inlined_call_operand.hbm [shape: f32[64,128], index: 5, kind: output, shape index: {1}]
  %6 = xla_tuple %s4, %s5
  %s7 = sld [smem:[#allocation0]]
  $region42: #{tpu_custom_call.1} parent=0
    _
  %s9 = ssub.s32 1, %s7
  %s10 = scalar_select 0, %s9, %s7
  $region1: #{tpu_custom_call.1} parent=0
    #allocation2 [shape = 'u8[32768]{0}', space=vmem, size = 0x8000, scoped, tag = 'output window, operand 1, single buffered']
    #allocation3 [shape = 's32[1]{0}', space=sflag, size = 0x4, scoped, tag = 'scoped memory for tpu_custom_call.1']
    %11 = vsyncpa [#allocation3], 0
    // Predicated region
    $region2: #{tpu_custom_call.1} parent=1 // pred_check
      _
    $region3: #{tpu_custom_call.1} parent=1 // pred_check_branch
      %13 = sbr.rel (0) target = $region5
    $region4: #{tpu_custom_call.1} parent=1 // pred_region
      _
    $region5: #{tpu_custom_call.1} parent=1 // pred_fallthru
      _
    // Predicated region
    $region6: #{tpu_custom_call.1} parent=1 // pred_check
      _
    $region7: #{tpu_custom_call.1} parent=1 // pred_check_branch
      %15 = sbr.rel (0) target = $region9
    $region8: #{tpu_custom_call.1} parent=1 // pred_region
      _
    $region9: #{tpu_custom_call.1} parent=1 // pred_fallthru
      _
    // Predicated region
    $region10: #{tpu_custom_call.1} parent=1 // pred_check
      _
    $region11: #{tpu_custom_call.1} parent=1 // pred_check_branch
      %17 = sbr.rel (0) target = $region13
    $region12: #{tpu_custom_call.1} parent=1 // pred_region
      _
    $region13: #{tpu_custom_call.1} parent=1 // pred_fallthru
      _
    // Predicated region
    $region14: #{tpu_custom_call.1} parent=1 // pred_check
      _
    $region15: #{tpu_custom_call.1} parent=1 // pred_check_branch
      %19 = sbr.rel (0) target = $region17
    $region16: #{tpu_custom_call.1} parent=1 // pred_region
      _
    $region17: #{tpu_custom_call.1} parent=1 // pred_fallthru
      _
    %p20 = scmp.eq.s32.totalorder 0, 0
    // Predicated region
    $region18: #{tpu_custom_call.1} parent=1 // pred_check
      %p21 = pneg %p20
    $region19: #{tpu_custom_call.1} parent=1 // pred_check_branch
      %23 = sbr.rel (%p21) target = $region21
    $region20: #{tpu_custom_call.1} parent=1 // pred_region
      %vm24 = vcmask 261120
      %25 = vst.msk [vmem:[%s4] sm:$0xff] %vm24, 0.0
      %26 = vst.msk [vmem:[%s4 + $0x8] sm:$0xff] %vm24, 0.0
      %27 = vst.msk [vmem:[%s4 + $0x10] sm:$0xff] %vm24, 0.0
      %28 = vst.msk [vmem:[%s4 + $0x18] sm:$0xff] %vm24, 0.0
      %29 = vst.msk [vmem:[%s4 + $0x20] sm:$0xff] %vm24, 0.0
      %30 = vst.msk [vmem:[%s4 + $0x28] sm:$0xff] %vm24, 0.0
      %31 = vst.msk [vmem:[%s4 + $0x30] sm:$0xff] %vm24, 0.0
      %32 = vst.msk [vmem:[%s4 + $0x38] sm:$0xff] %vm24, 0.0
    $region21: #{tpu_custom_call.1} parent=1 // pred_fallthru
      _
    %v33 = vld [vmem:[%s0] sm:$0xff]
    %v34 = vld [vmem:[%s0 + $0x8] sm:$0xff]
    %v35 = vld [vmem:[%s0 + $0x10] sm:$0xff]
    %v36 = vld [vmem:[%s0 + $0x18] sm:$0xff]
    %v37 = vld [vmem:[%s0 + $0x20] sm:$0xff]
    %v38 = vld [vmem:[%s0 + $0x28] sm:$0xff]
    %v39 = vld [vmem:[%s0 + $0x30] sm:$0xff]
    %v40 = vld [vmem:[%s0 + $0x38] sm:$0xff]
    %v41 = vlaneseq
    %v42 = vand.u32 %v41, 127
    %s43 = smul.u32 0, 56
    %v44 = vstv %s43
    %v45 = vadd.s32 %v42, %v44
    %46 = vset.pattern.permute.xlu0 0
    %47 = vperm.xlu0 %46, %v33
    %v48 = vpop.permute.xlu0 %47
    %49 = vset.pattern.permute.xlu0 0
    %50 = vperm.xlu0 %49, %v34
    %v51 = vpop.permute.xlu0 %50
    %52 = vset.pattern.permute.xlu0 0
    %53 = vperm.xlu0 %52, %v35
    %v54 = vpop.permute.xlu0 %53
    %55 = vset.pattern.permute.xlu0 0
    %56 = vperm.xlu0 %55, %v36
    %v57 = vpop.permute.xlu0 %56
    %58 = vset.pattern.permute.xlu0 0
    %59 = vperm.xlu0 %58, %v37
    %v60 = vpop.permute.xlu0 %59
    %61 = vset.pattern.permute.xlu0 0
    %62 = vperm.xlu0 %61, %v38
    %v63 = vpop.permute.xlu0 %62
    %64 = vset.pattern.permute.xlu0 0
    %65 = vperm.xlu0 %64, %v39
    %v66 = vpop.permute.xlu0 %65
    %67 = vset.pattern.permute.xlu0 0
    %68 = vperm.xlu0 %67, %v40
    %v69 = vpop.permute.xlu0 %68
    %vm70 = vcmp.eq.s32.totalorder %v45, %v48
    %vm71 = vcmp.eq.s32.totalorder %v45, %v51
    %vm72 = vcmp.eq.s32.totalorder %v45, %v54
    %vm73 = vcmp.eq.s32.totalorder %v45, %v57
    %vm74 = vcmp.eq.s32.totalorder %v45, %v60
    %vm75 = vcmp.eq.s32.totalorder %v45, %v63
    %vm76 = vcmp.eq.s32.totalorder %v45, %v66
    %vm77 = vcmp.eq.s32.totalorder %v45, %v69
    %v78 = vsel %vm70, 1, 0
    %v79 = vsel %vm71, 1, 0
    %v80 = vsel %vm72, 1, 0
    %v81 = vsel %vm73, 1, 0
    %v82 = vsel %vm74, 1, 0
    %v83 = vsel %vm75, 1, 0
    %v84 = vsel %vm76, 1, 0
    %v85 = vsel %vm77, 1, 0
    %v86 = vcvt.s32.f32 %v78
    %v87 = vcvt.s32.f32 %v79
    %v88 = vcvt.s32.f32 %v80
    %v89 = vcvt.s32.f32 %v81
    %v90 = vcvt.s32.f32 %v82
    %v91 = vcvt.s32.f32 %v83
    %v92 = vcvt.s32.f32 %v84
    %v93 = vcvt.s32.f32 %v85
    %v94 = vld [vmem:[%s4] sm:$0xff]
    %v95 = vld [vmem:[%s4 + $0x8] sm:$0xff]
    %v96 = vld [vmem:[%s4 + $0x10] sm:$0xff]
    %v97 = vld [vmem:[%s4 + $0x18] sm:$0xff]
    %v98 = vld [vmem:[%s4 + $0x20] sm:$0xff]
    %v99 = vld [vmem:[%s4 + $0x28] sm:$0xff]
    %v100 = vld [vmem:[%s4 + $0x30] sm:$0xff]
    %v101 = vld [vmem:[%s4 + $0x38] sm:$0xff]
    %v102 = vld [vmem:[%s1] sm:$0xff]
    %v103 = vld [vmem:[%s1 + $0x8] sm:$0xff]
    %v104 = vld [vmem:[%s1 + $0x10] sm:$0xff]
    %v105 = vld [vmem:[%s1 + $0x18] sm:$0xff]
    %v106 = vld [vmem:[%s1 + $0x20] sm:$0xff]
    %v107 = vld [vmem:[%s1 + $0x28] sm:$0xff]
    %v108 = vld [vmem:[%s1 + $0x30] sm:$0xff]
    %vm109 = vcmask 457728
    %v111 = vsel %vm109, %v86, 0
    %v114 = vsel %vm109, %v87, 0
    %v117 = vsel %vm109, %v88, 0
    %v120 = vsel %vm109, %v89, 0
    %v123 = vsel %vm109, %v90, 0
    %v126 = vsel %vm109, %v91, 0
    %v129 = vsel %vm109, %v92, 0
    %v132 = vsel %vm109, %v93, 0
    %134 = vmatprep.subr.mxu0 0.0
    %135 = vmatpush1.msra.mxu0 %v102
    %136 = vmatprep.subr.mxu0 0.0
    %137 = vmatpush1.msra.mxu0 %v103
    %138 = vmatprep.subr.mxu0 0.0
    %139 = vmatpush1.msra.mxu0 %v104
    %140 = vmatprep.subr.mxu0 0.0
    %141 = vmatpush1.msra.mxu0 %v105
    %142 = vmatprep.subr.mxu0 0.0
    %143 = vmatpush1.msra.mxu0 %v106
    %144 = vmatprep.subr.mxu0 0.0
    %145 = vmatpush1.msra.mxu0 %v107
    %146 = vmatprep.subr.mxu0 0.0
    %147 = vmatpush1.msra.mxu0 %v108
    %148 = vmatprep.subr.mxu0 0.0
    %149 = vmatpush1.msra.mxu0 0.0
    %150 = vmatprep.subr.mxu0 0.0
    %151 = vmatpush1.msra.mxu0 0.0
    %152 = vmatprep.subr.mxu0 0.0
    %153 = vmatpush1.msra.mxu0 0.0
    %154 = vmatprep.subr.mxu0 0.0
    %155 = vmatpush1.msra.mxu0 0.0
    %156 = vmatprep.subr.mxu0 0.0
    %157 = vmatpush1.msra.mxu0 0.0
    %158 = vmatprep.subr.mxu0 0.0
    %159 = vmatpush1.msra.mxu0 0.0
    %160 = vmatprep.subr.mxu0 0.0
    %161 = vmatpush1.msra.mxu0 0.0
    %162 = vmatprep.subr.mxu0 0.0
    %163 = vmatpush1.msra.mxu0 0.0
    %164 = vmatprep.subr.mxu0 0.0
    %165 = vmatpush1.msra.mxu0 0.0
    %166 = vmatprep.subr.mxu0 0.0
    %167 = vmatpush1.msra.mxu0 0.0
    %168 = vmatprep.subr.mxu0 0.0
    %169 = vmatpush1.msra.mxu0 0.0
    %170 = vmatprep.subr.mxu0 0.0
    %171 = vmatpush1.msra.mxu0 0.0
    %172 = vmatprep.subr.mxu0 0.0
    %173 = vmatpush1.msra.mxu0 0.0
    %174 = vmatprep.subr.mxu0 0.0
    %175 = vmatpush1.msra.mxu0 0.0
    %176 = vmatprep.subr.mxu0 0.0
    %177 = vmatpush1.msra.mxu0 0.0
    %178 = vmatprep.subr.mxu0 0.0
    %179 = vmatpush1.msra.mxu0 0.0
    %180 = vmatprep.subr.mxu0 0.0
    %181 = vmatpush1.msra.mxu0 0.0
    %182 = vmatprep.subr.mxu0 0.0
    %183 = vmatpush1.msra.mxu0 0.0
    %184 = vmatprep.subr.mxu0 0.0
    %185 = vmatpush1.msra.mxu0 0.0
    %186 = vmatprep.subr.mxu0 0.0
    %187 = vmatpush1.msra.mxu0 0.0
    %188 = vmatprep.subr.mxu0 0.0
    %189 = vmatpush1.msra.mxu0 0.0
    %190 = vmatprep.subr.mxu0 0.0
    %191 = vmatpush1.msra.mxu0 0.0
    %192 = vmatprep.subr.mxu0 0.0
    %193 = vmatpush1.msra.mxu0 0.0
    %194 = vmatprep.subr.mxu0 0.0
    %195 = vmatpush1.msra.mxu0 0.0
    %196 = vmatprep.subr.mxu0 0.0
    %197 = vmatpush1.msra.mxu0 0.0
    %198 = vmatprep.mubr.f32.mxu0 0.0
    %199 = vmatmul.mubr.f32.gmra.mrb[0].mxu0 %v111
    %v200 = vpop.f32.mrb[0].mxu0
    %v201 = vadd.f32 0.0, %v200
    %v202 = vpop.f32.mrb[0].mxu0
    %203 = vmatprep.mubr.f32.mxu0 0.0
    %204 = vmatmul.mubr.f32.gmra.mrb[0].mxu0 %v114
    %v205 = vpop.f32.mrb[0].mxu0
    %v206 = vadd.f32 0.0, %v205
    %v207 = vpop.f32.mrb[0].mxu0
    %208 = vmatprep.mubr.f32.mxu0 0.0
    %209 = vmatmul.mubr.f32.gmra.mrb[0].mxu0 %v117
    %v210 = vpop.f32.mrb[0].mxu0
    %v211 = vadd.f32 0.0, %v210
    %v212 = vpop.f32.mrb[0].mxu0
    %213 = vmatprep.mubr.f32.mxu0 0.0
    %214 = vmatmul.mubr.f32.gmra.mrb[0].mxu0 %v120
    %v215 = vpop.f32.mrb[0].mxu0
    %v216 = vadd.f32 0.0, %v215
    %v217 = vpop.f32.mrb[0].mxu0
    %218 = vmatprep.mubr.f32.mxu0 0.0
    %219 = vmatmul.mubr.f32.gmra.mrb[0].mxu0 %v123
    %v220 = vpop.f32.mrb[0].mxu0
    %v221 = vadd.f32 0.0, %v220
    %v222 = vpop.f32.mrb[0].mxu0
    %223 = vmatprep.mubr.f32.mxu0 0.0
    %224 = vmatmul.mubr.f32.gmra.mrb[0].mxu0 %v126
    %v225 = vpop.f32.mrb[0].mxu0
    %v226 = vadd.f32 0.0, %v225
    %v227 = vpop.f32.mrb[0].mxu0
    %228 = vmatprep.mubr.f32.mxu0 0.0
    %229 = vmatmul.mubr.f32.gmra.mrb[0].mxu0 %v129
    %v230 = vpop.f32.mrb[0].mxu0
    %v231 = vadd.f32 0.0, %v230
    %v232 = vpop.f32.mrb[0].mxu0
    %233 = vmatprep.mubr.f32.mxu0 0.0
    %234 = vmatmul.mubr.f32.gmra.mrb[0].mxu0 %v132
    %v235 = vpop.f32.mrb[0].mxu0
    %v236 = vadd.f32 0.0, %v235
    %v237 = vpop.f32.mrb[0].mxu0
    %238 = vdwg.mxu0
    %v239 = vadd.f32 %v94, %v201
    %v240 = vadd.f32 %v95, %v206
    %v241 = vadd.f32 %v96, %v211
    %v242 = vadd.f32 %v97, %v216
    %v243 = vadd.f32 %v98, %v221
    %v244 = vadd.f32 %v99, %v226
    %v245 = vadd.f32 %v100, %v231
    %v246 = vadd.f32 %v101, %v236
    %vm247 = vcmask 261120
    %248 = vst.msk [vmem:[%s4] sm:$0xff] %vm247, %v239
    %249 = vst.msk [vmem:[%s4 + $0x8] sm:$0xff] %vm247, %v240
    %250 = vst.msk [vmem:[%s4 + $0x10] sm:$0xff] %vm247, %v241
    %251 = vst.msk [vmem:[%s4 + $0x18] sm:$0xff] %vm247, %v242
    %252 = vst.msk [vmem:[%s4 + $0x20] sm:$0xff] %vm247, %v243
    %253 = vst.msk [vmem:[%s4 + $0x28] sm:$0xff] %vm247, %v244
    %254 = vst.msk [vmem:[%s4 + $0x30] sm:$0xff] %vm247, %v245
    %255 = vst.msk [vmem:[%s4 + $0x38] sm:$0xff] %vm247, %v246
    // Predicated region
    $region22: #{tpu_custom_call.1} parent=1 // pred_check
      %p256 = pneg %p20
    $region23: #{tpu_custom_call.1} parent=1 // pred_check_branch
      %258 = sbr.rel (%p256) target = $region25
    $region24: #{tpu_custom_call.1} parent=1 // pred_region
      %v259 = vld [vmem:[%s4] sm:$0xff]
      %v260 = vld [vmem:[%s4 + $0x8] sm:$0xff]
      %v261 = vld [vmem:[%s4 + $0x10] sm:$0xff]
      %v262 = vld [vmem:[%s4 + $0x18] sm:$0xff]
      %v263 = vld [vmem:[%s4 + $0x20] sm:$0xff]
      %v264 = vld [vmem:[%s4 + $0x28] sm:$0xff]
      %v265 = vld [vmem:[%s4 + $0x30] sm:$0xff]
      %v266 = vld [vmem:[%s4 + $0x38] sm:$0xff]
      %v267 = vld [vmem:[%s2] sm:$0xff]
      %v268 = vld [vmem:[%s2 + $0x8] sm:$0xff]
      %v269 = vld [vmem:[%s2 + $0x10] sm:$0xff]
      %v270 = vld [vmem:[%s2 + $0x18] sm:$0xff]
      %v271 = vld [vmem:[%s3] sm:$0x1]
      %v273 = vlaneseq
      %v274 = vshrl.u32 %v273, 7
      %v275 = vsub.s32 0, %v274
      %v276 = vrot.slane %v271, %v275
      %v279 = vsel %vm247, %v259, 0
      %v282 = vsel %vm247, %v260, 0
      %v285 = vsel %vm247, %v261, 0
      %v288 = vsel %vm247, %v262, 0
      %v291 = vsel %vm247, %v263, 0
      %v294 = vsel %vm247, %v264, 0
      %v297 = vsel %vm247, %v265, 0
      %v300 = vsel %vm247, %v266, 0
      %302 = vmatprep.subr.mxu0 0.0
      %303 = vmatpush1.msra.mxu0 %v267
      %304 = vmatprep.subr.mxu0 0.0
      %305 = vmatpush1.msra.mxu0 %v268
      %306 = vmatprep.subr.mxu0 0.0
      %307 = vmatpush1.msra.mxu0 %v269
      %308 = vmatprep.subr.mxu0 0.0
      %309 = vmatpush1.msra.mxu0 %v270
      %310 = vmatprep.subr.mxu0 0.0
      %311 = vmatpush1.msra.mxu0 0.0
      %312 = vmatprep.subr.mxu0 0.0
      %313 = vmatpush1.msra.mxu0 0.0
      %314 = vmatprep.subr.mxu0 0.0
      %315 = vmatpush1.msra.mxu0 0.0
      %316 = vmatprep.subr.mxu0 0.0
      %317 = vmatpush1.msra.mxu0 0.0
      %318 = vmatprep.subr.mxu0 0.0
      %319 = vmatpush1.msra.mxu0 0.0
      %320 = vmatprep.subr.mxu0 0.0
      %321 = vmatpush1.msra.mxu0 0.0
      %322 = vmatprep.subr.mxu0 0.0
      %323 = vmatpush1.msra.mxu0 0.0
      %324 = vmatprep.subr.mxu0 0.0
      %325 = vmatpush1.msra.mxu0 0.0
      %326 = vmatprep.subr.mxu0 0.0
      %327 = vmatpush1.msra.mxu0 0.0
      %328 = vmatprep.subr.mxu0 0.0
      %329 = vmatpush1.msra.mxu0 0.0
      %330 = vmatprep.subr.mxu0 0.0
      %331 = vmatpush1.msra.mxu0 0.0
      %332 = vmatprep.subr.mxu0 0.0
      %333 = vmatpush1.msra.mxu0 0.0
      %334 = vmatprep.subr.mxu0 0.0
      %335 = vmatpush1.msra.mxu0 0.0
      %336 = vmatprep.subr.mxu0 0.0
      %337 = vmatpush1.msra.mxu0 0.0
      %338 = vmatprep.subr.mxu0 0.0
      %339 = vmatpush1.msra.mxu0 0.0
      %340 = vmatprep.subr.mxu0 0.0
      %341 = vmatpush1.msra.mxu0 0.0
      %342 = vmatprep.subr.mxu0 0.0
      %343 = vmatpush1.msra.mxu0 0.0
      %344 = vmatprep.subr.mxu0 0.0
      %345 = vmatpush1.msra.mxu0 0.0
      %346 = vmatprep.subr.mxu0 0.0
      %347 = vmatpush1.msra.mxu0 0.0
      %348 = vmatprep.subr.mxu0 0.0
      %349 = vmatpush1.msra.mxu0 0.0
      %350 = vmatprep.subr.mxu0 0.0
      %351 = vmatpush1.msra.mxu0 0.0
      %352 = vmatprep.subr.mxu0 0.0
      %353 = vmatpush1.msra.mxu0 0.0
      %354 = vmatprep.subr.mxu0 0.0
      %355 = vmatpush1.msra.mxu0 0.0
      %356 = vmatprep.subr.mxu0 0.0
      %357 = vmatpush1.msra.mxu0 0.0
      %358 = vmatprep.subr.mxu0 0.0
      %359 = vmatpush1.msra.mxu0 0.0
      %360 = vmatprep.subr.mxu0 0.0
      %361 = vmatpush1.msra.mxu0 0.0
      %362 = vmatprep.subr.mxu0 0.0
      %363 = vmatpush1.msra.mxu0 0.0
      %364 = vmatprep.subr.mxu0 0.0
      %365 = vmatpush1.msra.mxu0 0.0
      %366 = vmatprep.mubr.f32.mxu0 0.0
      %367 = vmatmul.mubr.f32.gmra.mrb[0].mxu0 %v279
      %v368 = vpop.f32.mrb[0].mxu0
      %v369 = vadd.f32 %v276, %v368
      %v370 = vpop.f32.mrb[0].mxu0
      %371 = vmatprep.mubr.f32.mxu0 0.0
      %372 = vmatmul.mubr.f32.gmra.mrb[0].mxu0 %v282
      %v373 = vpop.f32.mrb[0].mxu0
      %v374 = vadd.f32 %v276, %v373
      %v375 = vpop.f32.mrb[0].mxu0
      %376 = vmatprep.mubr.f32.mxu0 0.0
      %377 = vmatmul.mubr.f32.gmra.mrb[0].mxu0 %v285
      %v378 = vpop.f32.mrb[0].mxu0
      %v379 = vadd.f32 %v276, %v378
      %v380 = vpop.f32.mrb[0].mxu0
      %381 = vmatprep.mubr.f32.mxu0 0.0
      %382 = vmatmul.mubr.f32.gmra.mrb[0].mxu0 %v288
      %v383 = vpop.f32.mrb[0].mxu0
      %v384 = vadd.f32 %v276, %v383
      %v385 = vpop.f32.mrb[0].mxu0
      %386 = vmatprep.mubr.f32.mxu0 0.0
      %387 = vmatmul.mubr.f32.gmra.mrb[0].mxu0 %v291
      %v388 = vpop.f32.mrb[0].mxu0
      %v389 = vadd.f32 %v276, %v388
      %v390 = vpop.f32.mrb[0].mxu0
      %391 = vmatprep.mubr.f32.mxu0 0.0
      %392 = vmatmul.mubr.f32.gmra.mrb[0].mxu0 %v294
      %v393 = vpop.f32.mrb[0].mxu0
      %v394 = vadd.f32 %v276, %v393
      %v395 = vpop.f32.mrb[0].mxu0
      %396 = vmatprep.mubr.f32.mxu0 0.0
      %397 = vmatmul.mubr.f32.gmra.mrb[0].mxu0 %v297
      %v398 = vpop.f32.mrb[0].mxu0
      %v399 = vadd.f32 %v276, %v398
      %v400 = vpop.f32.mrb[0].mxu0
      %401 = vmatprep.mubr.f32.mxu0 0.0
      %402 = vmatmul.mubr.f32.gmra.mrb[0].mxu0 %v300
      %v403 = vpop.f32.mrb[0].mxu0
      %v404 = vadd.f32 %v276, %v403
      %v405 = vpop.f32.mrb[0].mxu0
      %406 = vdwg.mxu0
      %407 = vst [vmem:[#allocation2] sm:$0xff] %v369
      %408 = vst [vmem:[#allocation2 + $0x8] sm:$0xff] %v374
      %409 = vst [vmem:[#allocation2 + $0x10] sm:$0xff] %v379
      %410 = vst [vmem:[#allocation2 + $0x18] sm:$0xff] %v384
      %411 = vst [vmem:[#allocation2 + $0x20] sm:$0xff] %v389
      %412 = vst [vmem:[#allocation2 + $0x28] sm:$0xff] %v394
      %413 = vst [vmem:[#allocation2 + $0x30] sm:$0xff] %v399
      %414 = vst [vmem:[#allocation2 + $0x38] sm:$0xff] %v404
    $region25: #{tpu_custom_call.1} parent=1 // pred_fallthru
      _
    // Predicated region
    $region26: #{tpu_custom_call.1} parent=1 // pred_check
      _
    $region27: #{tpu_custom_call.1} parent=1 // pred_check_branch
      %416 = sbr.rel (0) target = $region29
    $region28: #{tpu_custom_call.1} parent=1 // pred_region
      _
    $region29: #{tpu_custom_call.1} parent=1 // pred_fallthru
      _
    // Predicated region
    $region30: #{tpu_custom_call.1} parent=1 // pred_check
      _
    $region31: #{tpu_custom_call.1} parent=1 // pred_check_branch
      %418 = sbr.rel (0) target = $region33
    $region32: #{tpu_custom_call.1} parent=1 // pred_region
      %s420 = ssub.s32 1024, 1024
      %421 = vsyncadd [#allocation3], %s420
      %s422 = sshll.u32 [#allocation2], 4
      %s423 = int_to_ptr.vmem [resolvable:$true] %s422
      %428 = dma.vmem_to_hbm [thread:$0]  %s423, 1024, %s5, [#allocation3], 128, 128, 8
    $region33: #{tpu_custom_call.1} parent=1 // pred_fallthru
      _
    // Predicated region
    $region34: #{tpu_custom_call.1} parent=1 // pred_check
      _
    $region35: #{tpu_custom_call.1} parent=1 // pred_check_branch
      %430 = sbr.rel (0) target = $region37
    $region36: #{tpu_custom_call.1} parent=1 // pred_region
      _
    $region37: #{tpu_custom_call.1} parent=1 // pred_fallthru
      _
    // Predicated region
    $region38: #{tpu_custom_call.1} parent=1 // pred_check
      _
    $region39: #{tpu_custom_call.1} parent=1 // pred_check_branch
      %432 = sbr.rel (0) target = $region41
    $region40: #{tpu_custom_call.1} parent=1 // pred_region
      %433 = dma.done [#allocation3], 1024
    $region41: #{tpu_custom_call.1} parent=1 // pred_fallthru
      _
    %434 = vsyncpa [#allocation3], 1

</llo_original>
